<compile_context>
chip_gen: v5e
topology: v5e:2x2
jax: 0.10.0
libtpu: 0.0.40
codegen_flags: <defaults>
</compile_context>

<pallas_src>
import functools

import jax
import jax.numpy as jnp
from jax.experimental import pallas as pl
from jax.experimental.pallas import tpu as pltpu


NEG_INF = jnp.float32(-1e30)   # "minus infinity" bias for padded action lanes
A_PAD = 128                    # lane-dense padded action width
MAX_ROWS_PER_TILE = 8192       # ~ (x 128B + out 512B) * 2 bufs * 8192 ≈ 10 MB VMEM


def _round_up(n, m):
    return ((n + m - 1) // m) * m


def make_policy_kernel(obs, hidden):
    """Kernel closure so the static slice boundaries are Python constants."""

    def policy_kernel(x_ref, w1a_ref, w2a_ref, out_ref):
        # Layer 1: static (zero-cost) slices of the packed (W1 ; b1) block.
        x = x_ref[...]                                            # [TB, obs]
        w1 = w1a_ref[:obs, :]                                     # [obs, H]
        b1 = w1a_ref[obs:, :]                                     # [1, H]
        h = jnp.dot(x, w1, preferred_element_type=jnp.float32) + b1
        h = jnp.maximum(h, 0.0)                                   # [TB, H]

        # Layer 2: static slices of the packed (W2 ; b2) block.
        w2 = w2a_ref[:hidden, :]                                  # [H, A_PAD]
        b2 = w2a_ref[hidden:, :]                                  # [1, A_PAD]
        logits = jnp.dot(h, w2,
                         preferred_element_type=jnp.float32) + b2  # [TB, A_PAD]

        # Numerically-stable softmax over the (padded, lane-dense) action axis.
        # Padded lanes carry logits of -1e30 -> exp underflows to exactly 0.
        m = jnp.max(logits, axis=-1, keepdims=True)
        e = jnp.exp(logits - m)
        denom = jnp.sum(e, axis=-1, keepdims=True)
        out_ref[...] = (e / denom).astype(out_ref.dtype)          # exact rows-sum-to-1

    return policy_kernel


def pack_params(w1, b1, w2, b2, a_pad=A_PAD):
    """Pack (w1,b1) and (w2,b2) into two blobs.

    Call ONCE per parameter update (not per forward) and reuse the result:
    the pack itself is a handful of HBM copies that would otherwise dominate
    this tiny kernel's traffic if re-run every call.
    """
    obs, hidden = w1.shape
    act = w2.shape[1]
    # Layer 1: [obs+1, H]; last row is b1 (added in-kernel as a broadcast).
    w1a = jnp.concatenate([w1.astype(jnp.float32),
                           b1.reshape(1, hidden).astype(jnp.float32)], axis=0)
    # Layer 2: [H+1, a_pad]; weight pad columns are zero, bias pad lanes are
    # -1e30 so padded logits vanish under softmax.
    w2p = jnp.zeros((hidden, a_pad), jnp.float32).at[:, :act].set(w2)
    b2p = jnp.full((1, a_pad), NEG_INF, jnp.float32).at[:, :act].set(
        b2.reshape(1, act))
    w2a = jnp.concatenate([w2p, b2p], axis=0)
    return w1a, w2a


def policy_forward_packed(x, w1a, w2a, *, act, block_b=None,
                          out_dtype=jnp.float32):
    """x: [B, obs] f32; w1a: [obs+1, H]; w2a: [H+1, A_PAD]; act: true #actions."""
    b, obs = x.shape
    hidden = w1a.shape[1]
    a_pad = w2a.shape[1]

    if block_b is None:
        # Two grid steps by default: shards across both v7x TensorCores under
        # "parallel"; on single-TC v5e/v6e the extra grid step costs ~0.35 us.
        steps = 2 if b >= 16 else 1
        tb = _round_up(pl.cdiv(b, steps), 8)
    else:
        tb = _round_up(min(block_b, b), 8)
    tb = min(tb, MAX_ROWS_PER_TILE)

    grid = (pl.cdiv(b, tb),)   # ragged edge tile handled by Pallas clipping

    out = pl.pallas_call(
        make_policy_kernel(obs, hidden),
        out_shape=jax.ShapeDtypeStruct((b, a_pad), out_dtype),
        grid=grid,
        in_specs=[
            pl.BlockSpec((tb, obs), lambda i: (i, 0)),            # x tile (streamed)
            pl.BlockSpec((obs + 1, hidden), lambda i: (0, 0)),    # resident W1|b1
            pl.BlockSpec((hidden + 1, a_pad), lambda i: (0, 0)),  # resident W2|b2
        ],
        out_specs=pl.BlockSpec((tb, a_pad), lambda i: (i, 0)),    # lane-dense slab
        compiler_params=pltpu.CompilerParams(
            dimension_semantics=("parallel",)),                   # v7x: 2 TCs
    )(x, w1a, w2a)

    # Strip the action-lane padding; under jit this slice fuses into the
    # consumer.  (Callers that can consume the padded [B, 128] slab directly
    # may skip it — rows already sum to 1.)
    return out[:, :act]


def init_params(key, observation_size, action_size, hidden=16):
    """Deterministic init mirroring nn.Linear default (uniform +/- 1/sqrt(fan_in))."""
    k1, k2, k3, k4 = jax.random.split(key, 4)
    bound1 = 1.0 / jnp.sqrt(jnp.float32(observation_size))
    bound2 = 1.0 / jnp.sqrt(jnp.float32(hidden))
    # Stored as [in, out] (transposed vs. PyTorch's [out, in]) -> kernel does x @ W.
    w1 = jax.random.uniform(k1, (observation_size, hidden), jnp.float32,
                            -bound1, bound1)
    b1 = jax.random.uniform(k2, (1, hidden), jnp.float32, -bound1, bound1)
    w2 = jax.random.uniform(k3, (hidden, action_size), jnp.float32,
                            -bound2, bound2)
    b2 = jax.random.uniform(k4, (1, action_size), jnp.float32, -bound2, bound2)
    return w1, b1, w2, b2


if __name__ == "__main__":
    observation_size = 32
    action_size = 4
    batch = 256          # rollout slab -> 2 grid steps of 128 rows (both v7x TCs)

    key = jax.random.PRNGKey(0)
    kx, kp = jax.random.split(key)
    x = jax.random.normal(kx, (batch, observation_size), jnp.float32)
    w1, b1, w2, b2 = init_params(kp, observation_size, action_size)

    # Pack parameters ONCE (outside the per-forward path) and reuse.
    w1a, w2a = pack_params(w1, b1, w2, b2)
    w1a, w2a = jax.block_until_ready((w1a, w2a))

    fwd = jax.jit(functools.partial(policy_forward_packed, act=action_size))
    probs = fwd(x, w1a, w2a)
    jax.block_until_ready(probs)

    # Sanity: softmax rows must sum to ~1 (exact divide), values in [0, 1].
    assert probs.shape == (batch, action_size)
    row_sums = jnp.sum(probs, axis=1)
    assert bool(jnp.all(jnp.abs(row_sums - 1.0) < 1e-5))
    assert bool(jnp.all(probs >= 0.0))
    assert bool(jnp.all(probs <= 1.0 + 1e-6))

    # Cross-check against a pure-JAX reference of the same math.
    ref_h = jnp.maximum(x @ w1 + b1, 0.0)
    ref_logits = ref_h @ w2 + b2
    ref_probs = jax.nn.softmax(ref_logits, axis=1)
    assert bool(jnp.all(jnp.abs(probs - ref_probs) < 5e-3))

    # Also exercise a ragged batch (B not a multiple of the tile) to verify
    # the edge-block clipping path.
    x_odd = x[:67]
    probs_odd = fwd(x_odd, w1a, w2a)
    jax.block_until_ready(probs_odd)
    assert probs_odd.shape == (67, action_size)
    assert bool(jnp.all(jnp.abs(jnp.sum(probs_odd, axis=1) - 1.0) < 1e-5))
    assert bool(jnp.all(jnp.abs(probs_odd - ref_probs[:67]) < 5e-3))

    print("KERNEL_OK")
</pallas_src>

<mosaic_0001>
module attributes {stable_mosaic.version = 11 : i64} {
  func.func @policy_kernel(%arg0: i32, %arg1: memref<128x32xf32, #tpu.memory_space<vmem>>, %arg2: memref<33x16xf32, #tpu.memory_space<vmem>>, %arg3: memref<17x128xf32, #tpu.memory_space<vmem>>, %arg4: memref<128x128xf32, #tpu.memory_space<vmem>>) attributes {dimension_semantics = [#tpu.dimension_semantics<parallel>], iteration_bounds = array<i64: 2>, scalar_prefetch = 0 : i64, scratch_operands = 0 : i64, tpu.core_type = #tpu.core_type<tc>, window_params = [{transform_indices = @transform_0, window_bounds = array<i64: 128, 32>}, {pipeline_mode = #tpu.pipeline_mode<synchronous>, transform_indices = @transform_1, window_bounds = array<i64: 33, 16>}, {pipeline_mode = #tpu.pipeline_mode<synchronous>, transform_indices = @transform_2, window_bounds = array<i64: 17, 128>}, {transform_indices = @transform_3, window_bounds = array<i64: 128, 128>}]} {
    %c0 = arith.constant 0 : index
    %c0_0 = arith.constant 0 : index
    %0 = vector.load %arg1[%c0, %c0_0] : memref<128x32xf32, #tpu.memory_space<vmem>>, vector<128x32xf32>
    %c0_1 = arith.constant 0 : index
    %c0_2 = arith.constant 0 : index
    %1 = vector.load %arg2[%c0_1, %c0_2] : memref<33x16xf32, #tpu.memory_space<vmem>>, vector<32x16xf32>
    %c32 = arith.constant 32 : index
    %c0_3 = arith.constant 0 : index
    %2 = vector.load %arg2[%c32, %c0_3] : memref<33x16xf32, #tpu.memory_space<vmem>>, vector<1x16xf32>
    %cst = arith.constant dense<0.000000e+00> : vector<128x16xf32>
    %3 = tpu.matmul %0, %1, %cst {dimension_numbers = #tpu.dot_dimension_numbers<[1], [0], [0], [1], [0, 0, 1, 1], [], []>} : vector<128x32xf32>, vector<32x16xf32>, vector<128x16xf32> -> vector<128x16xf32>
    %4 = vector.broadcast %2 : vector<1x16xf32> to vector<128x16xf32>
    %5 = arith.addf %3, %4 : vector<128x16xf32>
    %cst_4 = arith.constant 0.000000e+00 : f32
    %6 = vector.broadcast %cst_4 : f32 to vector<128x16xf32>
    %7 = arith.maximumf %5, %6 : vector<128x16xf32>
    %c0_5 = arith.constant 0 : index
    %c0_6 = arith.constant 0 : index
    %8 = vector.load %arg3[%c0_5, %c0_6] : memref<17x128xf32, #tpu.memory_space<vmem>>, vector<16x128xf32>
    %c16 = arith.constant 16 : index
    %c0_7 = arith.constant 0 : index
    %9 = vector.load %arg3[%c16, %c0_7] : memref<17x128xf32, #tpu.memory_space<vmem>>, vector<1x128xf32>
    %cst_8 = arith.constant dense<0.000000e+00> : vector<128x128xf32>
    %10 = tpu.matmul %7, %8, %cst_8 {dimension_numbers = #tpu.dot_dimension_numbers<[1], [0], [0], [1], [0, 0, 1, 1], [], []>} : vector<128x16xf32>, vector<16x128xf32>, vector<128x128xf32> -> vector<128x128xf32>
    %11 = vector.broadcast %9 : vector<1x128xf32> to vector<128x128xf32>
    %12 = arith.addf %10, %11 : vector<128x128xf32>
    %cst_9 = arith.constant dense<0xFF800000> : vector<128xf32>
    %13 = vector.multi_reduction <maximumf>, %12, %cst_9 [1] : vector<128x128xf32> to vector<128xf32>
    %14 = vector.shape_cast %13 : vector<128xf32> to vector<128x1xf32>
    %15 = vector.broadcast %14 : vector<128x1xf32> to vector<128x128xf32>
    %16 = arith.subf %12, %15 : vector<128x128xf32>
    %17 = math.exp %16 : vector<128x128xf32>
    %cst_10 = arith.constant dense<0.000000e+00> : vector<128xf32>
    %18 = vector.multi_reduction <add>, %17, %cst_10 [1] : vector<128x128xf32> to vector<128xf32>
    %19 = vector.shape_cast %18 : vector<128xf32> to vector<128x1xf32>
    %20 = vector.broadcast %19 : vector<128x1xf32> to vector<128x128xf32>
    %21 = arith.divf %17, %20 : vector<128x128xf32>
    %c0_11 = arith.constant 0 : index
    %c0_12 = arith.constant 0 : index
    %22 = vector.load %arg4[%c0_11, %c0_12] : memref<128x128xf32, #tpu.memory_space<vmem>>, vector<128x128xf32>
    tpu.vector_store %arg4[%c0_11, %c0_12], %21 {strides = array<i32>} : memref<128x128xf32, #tpu.memory_space<vmem>>, vector<128x128xf32>,
    return
  }
  func.func @transform_0(%arg0: i32) -> (i32, i32) {
    %c0_i32 = arith.constant 0 : i32
    %c0_i32_0 = arith.constant 0 : i32
    return %arg0, %c0_i32 : i32, i32
  }
  func.func @transform_1(%arg0: i32) -> (i32, i32) {
    %c0_i32 = arith.constant 0 : i32
    %c0_i32_0 = arith.constant 0 : i32
    %c0_i32_1 = arith.constant 0 : i32
    return %c0_i32, %c0_i32_0 : i32, i32
  }
  func.func @transform_2(%arg0: i32) -> (i32, i32) {
    %c0_i32 = arith.constant 0 : i32
    %c0_i32_0 = arith.constant 0 : i32
    %c0_i32_1 = arith.constant 0 : i32
    return %c0_i32, %c0_i32_0 : i32, i32
  }
  func.func @transform_3(%arg0: i32) -> (i32, i32) {
    %c0_i32 = arith.constant 0 : i32
    %c0_i32_0 = arith.constant 0 : i32
    return %arg0, %c0_i32 : i32, i32
  }
}

</mosaic_0001>

<llo_original>
// kernel: policy_forward_packed.1
$region0: #{policy_forward_packed.1}
  #allocation0 [shape = 'u32[]', space=smem, size = 0x4, offset = 0x4, fixed_abs, tag = 'smem constant byte address 0x4 - core index']
  #allocation1 [shape = 'u32[72,128]{1,0:T(1,128)}', space=vmem, size = 0x9000, scoped, tag = 'internal scratch']
  %s0 = inlined_call_operand.vmem [shape: f32[256,32], index: 0, kind: input, shape index: {}]
  %s1 = inlined_call_operand.vmem [shape: f32[33,16], index: 1, kind: input, shape index: {}]
  %s2 = inlined_call_operand.vmem [shape: f32[17,128], index: 2, kind: input, shape index: {}]
  %s3 = inlined_call_operand.vmem [shape: f32[256,128], index: 3, kind: output, shape index: {}]
  %s4 = sld [smem:[#allocation0]]
  $region45: #{policy_forward_packed.1} parent=0
    _
  %s6 = ssub.s32 1, %s4
  %s7 = scalar_select 0, %s6, %s4
  loop: start=0, step=1, limit=4
  $region2: #{policy_forward_packed.1} parent=0 // loop_pre_header
    _
  $region3: #{policy_forward_packed.1} parent=0 // loop_header
    %s9 = sphi 0, %s13
    %p10 = scmp.ge.s32.totalorder %s9, 4
    %s19 = sphi 0, %s21
    %s22 = sphi 0, %s19
    %s23 = sphi 0, %s22
    %s39 = sphi 0, %s23
    %s43 = sphi 0, %s43
    %s45 = sphi 0, %s43
    %s46 = sphi 0, %s45
    %s60 = sphi 0, %s46
    %s64 = sphi 0, %s64
    %s66 = sphi 0, %s64
    %s67 = sphi 0, %s66
    %s81 = sphi 0, %s67
    %s87 = sphi 0, %s89
    %s90 = sphi 0, %s87
    %s91 = sphi 0, %s90
    %s107 = sphi 0, %s91
  $region4: #{policy_forward_packed.1} parent=0 // loop_header_branch
    %12 = sbr.rel (%p10) target = $region8
  $region5: #{policy_forward_packed.1} parent=0 // loop_body
    %s14 = ssub.s32 %s9, 1
    %s15 = ssub.s32 %s9, 2
    %s16 = sadd.s32 %s9, 1
    %s17 = ssub.s32 %s9, %s16
    %p18 = scmp.eq.s32.totalorder %s17, 0
    %s20 = sadd.s32 %s19, 1
    %s21 = scalar_select %p18, %s19, %s20
    %p24 = pneg %p18
    %p25 = scmp.eq.s32.totalorder %s9, 1
    %p26 = por %p24, %p25
    %p27 = scmp.ne.s32.totalorder %s19, %s22
    %p28 = scmp.eq.s32.totalorder %s9, 0
    %p29 = por %p27, %p28
    %p30 = scmp.ne.s32.totalorder %s19, %s22
    %p31 = scmp.eq.s32.totalorder %s14, 1
    %p32 = por %p30, %p31
    %p33 = scmp.ne.s32.totalorder %s22, %s23
    %p34 = scmp.eq.s32.totalorder %s14, 0
    %p35 = por %p33, %p34
    %p36 = scmp.ne.s32.totalorder %s22, %s23
    %p37 = scmp.eq.s32.totalorder %s15, 1
    %p38 = por %p36, %p37
    %p40 = scmp.ne.s32.totalorder %s23, %s39
    %p41 = scmp.eq.s32.totalorder %s15, 0
    %p42 = por %p40, %p41
    %s44 = sadd.s32 %s43, 1
    %p47 = scmp.eq.s32.totalorder %s9, 1
    %p48 = scmp.ne.s32.totalorder %s43, %s45
    %p49 = scmp.eq.s32.totalorder %s9, 0
    %p50 = por %p48, %p49
    %p51 = scmp.ne.s32.totalorder %s43, %s45
    %p52 = scmp.eq.s32.totalorder %s14, 1
    %p53 = por %p51, %p52
    %p54 = scmp.ne.s32.totalorder %s45, %s46
    %p55 = scmp.eq.s32.totalorder %s14, 0
    %p56 = por %p54, %p55
    %p57 = scmp.ne.s32.totalorder %s45, %s46
    %p58 = scmp.eq.s32.totalorder %s15, 1
    %p59 = por %p57, %p58
    %p61 = scmp.ne.s32.totalorder %s46, %s60
    %p62 = scmp.eq.s32.totalorder %s15, 0
    %p63 = por %p61, %p62
    %s65 = sadd.s32 %s64, 1
    %p68 = scmp.eq.s32.totalorder %s9, 1
    %p69 = scmp.ne.s32.totalorder %s64, %s66
    %p70 = scmp.eq.s32.totalorder %s9, 0
    %p71 = por %p69, %p70
    %p72 = scmp.ne.s32.totalorder %s64, %s66
    %p73 = scmp.eq.s32.totalorder %s14, 1
    %p74 = por %p72, %p73
    %p75 = scmp.ne.s32.totalorder %s66, %s67
    %p76 = scmp.eq.s32.totalorder %s14, 0
    %p77 = por %p75, %p76
    %p78 = scmp.ne.s32.totalorder %s66, %s67
    %p79 = scmp.eq.s32.totalorder %s15, 1
    %p80 = por %p78, %p79
    %p82 = scmp.ne.s32.totalorder %s67, %s81
    %p83 = scmp.eq.s32.totalorder %s15, 0
    %p84 = por %p82, %p83
    %s85 = ssub.s32 %s9, %s16
    %p86 = scmp.eq.s32.totalorder %s85, 0
    %s88 = sadd.s32 %s87, 1
    %s89 = scalar_select %p86, %s87, %s88
    %p92 = pneg %p86
    %p93 = scmp.eq.s32.totalorder %s9, 1
    %p94 = por %p92, %p93
    %p95 = scmp.ne.s32.totalorder %s87, %s90
    %p96 = scmp.eq.s32.totalorder %s9, 0
    %p97 = por %p95, %p96
    %p98 = scmp.ne.s32.totalorder %s87, %s90
    %p99 = scmp.eq.s32.totalorder %s14, 1
    %p100 = por %p98, %p99
    %p101 = scmp.ne.s32.totalorder %s90, %s91
    %p102 = scmp.eq.s32.totalorder %s14, 0
    %p103 = por %p101, %p102
    %p104 = scmp.ne.s32.totalorder %s90, %s91
    %p105 = scmp.eq.s32.totalorder %s15, 1
    %p106 = por %p104, %p105
    %p108 = scmp.ne.s32.totalorder %s91, %s107
    %p109 = scmp.eq.s32.totalorder %s15, 0
    %p110 = por %p108, %p109
    %p111 = scmp.le.s32.totalorder 1, %s9
    %p112 = scmp.lt.s32.totalorder %s9, 3
    %p113 = pnand %p111, %p112
    %p114 = pneg %p113
    // Predicated region
    $region9: #{policy_forward_packed.1} parent=5 // pred_check
      _
    $region10: #{policy_forward_packed.1} parent=5 // pred_check_branch
      %116 = sbr.rel (%p113) target = $region12
    $region11: #{policy_forward_packed.1} parent=5 // pred_region
      %s117 = ssub.s32 %s9, 1
      // Predicated region
      $region13: #{policy_forward_packed.1} parent=11 // pred_check
        %p118 = pneg %p56
      $region14: #{policy_forward_packed.1} parent=11 // pred_check_branch
        %120 = sbr.rel (%p118) target = $region16
      $region15: #{policy_forward_packed.1} parent=11 // pred_region
        _
      $region16: #{policy_forward_packed.1} parent=11 // pred_fallthru
        _
      // Predicated region
      $region17: #{policy_forward_packed.1} parent=11 // pred_check
        %p121 = pneg %p77
      $region18: #{policy_forward_packed.1} parent=11 // pred_check_branch
        %123 = sbr.rel (%p121) target = $region20
      $region19: #{policy_forward_packed.1} parent=11 // pred_region
        _
      $region20: #{policy_forward_packed.1} parent=11 // pred_fallthru
        _
    $region12: #{policy_forward_packed.1} parent=5 // pred_fallthru
      _
    %p124 = scmp.lt.s32.totalorder %s9, 2
    // Predicated region
    $region21: #{policy_forward_packed.1} parent=5 // pred_check
      %p125 = pneg %p124
    $region22: #{policy_forward_packed.1} parent=5 // pred_check_branch
      %127 = sbr.rel (%p125) target = $region24
    $region23: #{policy_forward_packed.1} parent=5 // pred_region
      // Predicated region
      $region25: #{policy_forward_packed.1} parent=23 // pred_check
        %p128 = pneg %p29
      $region26: #{policy_forward_packed.1} parent=23 // pred_check_branch
        %130 = sbr.rel (%p128) target = $region28
      $region27: #{policy_forward_packed.1} parent=23 // pred_region
        %s131 = smul.u32 16, %s9
        %p132 = scmp.lt.s32.totalorder %s131, 31
        %s133 = scalar_select %p132, %s131, 31
        %s134 = smul.addr %s133, 8
        %s135 = scalar_lea.vmem %s0, %s134
        %s136 = smul.u32 16, %s9
      $region28: #{policy_forward_packed.1} parent=23 // pred_fallthru
        _
    $region24: #{policy_forward_packed.1} parent=5 // pred_fallthru
      _
    %p137 = scmp.le.s32.totalorder 1, %s9
    %p138 = scmp.lt.s32.totalorder %s9, 3
    %p139 = pnand %p137, %p138
    %p140 = pneg %p139
    // Predicated region
    $region29: #{policy_forward_packed.1} parent=5 // pred_check
      _
    $region30: #{policy_forward_packed.1} parent=5 // pred_check_branch
      %142 = sbr.rel (%p139) target = $region32
    $region31: #{policy_forward_packed.1} parent=5 // pred_region
      %s143 = ssub.s32 %s9, 1
      %s144 = smul.u32 16, %s14
      %p145 = scmp.lt.s32.totalorder %s144, 31
      %s146 = scalar_select %p145, %s144, 31
      %s147 = smul.addr %s146, 8
      %s148 = scalar_lea.vmem %s0, %s147
      %p149 = pneg %p35
      %p150 = pneg %p32
      %p151 = pneg %p56
      %p152 = pneg %p53
      %p153 = pneg %p77
      %p154 = pneg %p74
      %p155 = pneg %p103
      %p156 = pneg %p100
      %s157 = smul.u32 16, %s14
      %p158 = scmp.lt.s32.totalorder %s157, 31
      %s159 = scalar_select %p158, %s157, 31
      %s160 = smul.addr %s159, 8
      %s161 = scalar_lea.vmem %s3, %s160
      %s162 = smul.u32 16, %s14
      %p163 = scmp.lt.s32.totalorder %s162, 31
      %s164 = scalar_select %p163, %s162, 31
      %s165 = smul.addr %s164, 8
      %s166 = scalar_lea.vmem %s0, %s165
      %s167 = smul.u32 16, %s14
      %s168 = smul.u32 16, %s14
      %p169 = scmp.lt.s32.totalorder %s168, 31
      %s170 = scalar_select %p169, %s168, 31
      %s171 = smul.addr %s170, 8
      %s172 = scalar_lea.vmem %s3, %s171
      %s173 = smul.u32 16, %s14
      %v174 = vld [vmem:[%s166] sm:$0xff]
      %v175 = vld [vmem:[%s166 + $0x8] sm:$0xff]
      %v176 = vld [vmem:[%s166 + $0x10] sm:$0xff]
      %v177 = vld [vmem:[%s166 + $0x18] sm:$0xff]
      %v178 = vld [vmem:[%s166 + $0x20] sm:$0xff]
      %v179 = vld [vmem:[%s166 + $0x28] sm:$0xff]
      %v180 = vld [vmem:[%s166 + $0x30] sm:$0xff]
      %v181 = vld [vmem:[%s166 + $0x38] sm:$0xff]
      %v182 = vld [vmem:[%s166 + $0x40] sm:$0xff]
      %v183 = vld [vmem:[%s166 + $0x48] sm:$0xff]
      %v184 = vld [vmem:[%s166 + $0x50] sm:$0xff]
      %v185 = vld [vmem:[%s166 + $0x58] sm:$0xff]
      %v186 = vld [vmem:[%s166 + $0x60] sm:$0xff]
      %v187 = vld [vmem:[%s166 + $0x68] sm:$0xff]
      %v188 = vld [vmem:[%s166 + $0x70] sm:$0xff]
      %v189 = vld [vmem:[%s166 + $0x78] sm:$0xff]
      %v190 = vld [vmem:[%s1] sm:$0xff]
      %v191 = vld [vmem:[%s1 + $0x8] sm:$0xff]
      %v192 = vld [vmem:[%s1 + $0x10] sm:$0xff]
      %v193 = vld [vmem:[%s1 + $0x18] sm:$0xff]
      %v194 = vld [vmem:[%s1 + $0x20] sm:$0x1]
      %v195 = vperm.slane %v194, 0
      %vm196 = vcmask 261120
      %v198 = vsel %vm196, %v174, 0
      %v201 = vsel %vm196, %v175, 0
      %v204 = vsel %vm196, %v176, 0
      %v207 = vsel %vm196, %v177, 0
      %v210 = vsel %vm196, %v178, 0
      %v213 = vsel %vm196, %v179, 0
      %v216 = vsel %vm196, %v180, 0
      %v219 = vsel %vm196, %v181, 0
      %v222 = vsel %vm196, %v182, 0
      %v225 = vsel %vm196, %v183, 0
      %v228 = vsel %vm196, %v184, 0
      %v231 = vsel %vm196, %v185, 0
      %v234 = vsel %vm196, %v186, 0
      %v237 = vsel %vm196, %v187, 0
      %v240 = vsel %vm196, %v188, 0
      %v243 = vsel %vm196, %v189, 0
      %245 = vmatpush.msra.mxu0 0.0
      %246 = vmatpush.msra.mxu0 0.0
      %247 = vmatpush.msra.mxu0 0.0
      %248 = vmatpush.msra.mxu0 0.0
      %249 = vmatpush.msra.mxu0 0.0
      %250 = vmatpush.msra.mxu0 0.0
      %251 = vmatpush.msra.mxu0 0.0
      %252 = vmatpush.msra.mxu0 0.0
      %253 = vmatpush.msra.mxu0 0.0
      %254 = vmatpush.msra.mxu0 0.0
      %255 = vmatpush.msra.mxu0 0.0
      %256 = vmatpush.msra.mxu0 0.0
      %257 = vmatpush.msra.mxu0 %v193
      %258 = vmatpush.msra.mxu0 %v192
      %259 = vmatpush.msra.mxu0 %v191
      %260 = vmatpush.msra.mxu0 %v190
      %261 = vmatmul.f32.gmra.mxu0 %v198
      %v262 = vpop.f32.mrf.mxu0
      %v263 = vadd.f32 %v195, %v262
      %264 = vmatmul.f32.gmra.mxu0 %v201
      %v265 = vpop.f32.mrf.mxu0
      %v266 = vadd.f32 %v195, %v265
      %267 = vmatmul.f32.gmra.mxu0 %v204
      %v268 = vpop.f32.mrf.mxu0
      %v269 = vadd.f32 %v195, %v268
      %270 = vmatmul.f32.gmra.mxu0 %v207
      %v271 = vpop.f32.mrf.mxu0
      %v272 = vadd.f32 %v195, %v271
      %273 = vmatmul.f32.gmra.mxu0 %v210
      %v274 = vpop.f32.mrf.mxu0
      %v275 = vadd.f32 %v195, %v274
      %276 = vmatmul.f32.gmra.mxu0 %v213
      %v277 = vpop.f32.mrf.mxu0
      %v278 = vadd.f32 %v195, %v277
      %279 = vmatmul.f32.gmra.mxu0 %v216
      %v280 = vpop.f32.mrf.mxu0
      %v281 = vadd.f32 %v195, %v280
      %282 = vmatmul.f32.gmra.mxu0 %v219
      %v283 = vpop.f32.mrf.mxu0
      %v284 = vadd.f32 %v195, %v283
      %285 = vmatmul.f32.gmra.mxu0 %v222
      %v286 = vpop.f32.mrf.mxu0
      %v287 = vadd.f32 %v195, %v286
      %288 = vmatmul.f32.gmra.mxu0 %v225
      %v289 = vpop.f32.mrf.mxu0
      %v290 = vadd.f32 %v195, %v289
      %291 = vmatmul.f32.gmra.mxu0 %v228
      %v292 = vpop.f32.mrf.mxu0
      %v293 = vadd.f32 %v195, %v292
      %294 = vmatmul.f32.gmra.mxu0 %v231
      %v295 = vpop.f32.mrf.mxu0
      %v296 = vadd.f32 %v195, %v295
      %297 = vmatmul.f32.gmra.mxu0 %v234
      %v298 = vpop.f32.mrf.mxu0
      %v299 = vadd.f32 %v195, %v298
      %300 = vmatmul.f32.gmra.mxu0 %v237
      %v301 = vpop.f32.mrf.mxu0
      %v302 = vadd.f32 %v195, %v301
      %303 = vmatmul.f32.gmra.mxu0 %v240
      %v304 = vpop.f32.mrf.mxu0
      %v305 = vadd.f32 %v195, %v304
      %306 = vmatmul.f32.gmra.mxu0 %v243
      %v307 = vpop.f32.mrf.mxu0
      %v308 = vadd.f32 %v195, %v307
      %309 = vdwg.mxu0
      %v310 = vmax.f32 %v263, 0.0
      %v311 = vmax.f32 %v266, 0.0
      %v312 = vmax.f32 %v269, 0.0
      %v313 = vmax.f32 %v272, 0.0
      %v314 = vmax.f32 %v275, 0.0
      %v315 = vmax.f32 %v278, 0.0
      %v316 = vmax.f32 %v281, 0.0
      %v317 = vmax.f32 %v284, 0.0
      %v318 = vmax.f32 %v287, 0.0
      %v319 = vmax.f32 %v290, 0.0
      %v320 = vmax.f32 %v293, 0.0
      %v321 = vmax.f32 %v296, 0.0
      %v322 = vmax.f32 %v299, 0.0
      %v323 = vmax.f32 %v302, 0.0
      %v324 = vmax.f32 %v305, 0.0
      %v325 = vmax.f32 %v308, 0.0
      %v326 = vld [vmem:[%s2] sm:$0xff]
      %v327 = vld [vmem:[%s2 + $0x8] sm:$0xff]
      %v328 = vld [vmem:[%s2 + $0x10] sm:$0x1]
      %v329 = vperm.slane %v328, 0
      %vm330 = vcmask 130048
      %v332 = vsel %vm330, %v310, 0
      %v335 = vsel %vm330, %v311, 0
      %v338 = vsel %vm330, %v312, 0
      %v341 = vsel %vm330, %v313, 0
      %v344 = vsel %vm330, %v314, 0
      %v347 = vsel %vm330, %v315, 0
      %v350 = vsel %vm330, %v316, 0
      %v353 = vsel %vm330, %v317, 0
      %v356 = vsel %vm330, %v318, 0
      %v359 = vsel %vm330, %v319, 0
      %v362 = vsel %vm330, %v320, 0
      %v365 = vsel %vm330, %v321, 0
      %v368 = vsel %vm330, %v322, 0
      %v371 = vsel %vm330, %v323, 0
      %v374 = vsel %vm330, %v324, 0
      %v377 = vsel %vm330, %v325, 0
      %379 = vmatpush.msra.mxu0 0.0
      %380 = vmatpush.msra.mxu0 0.0
      %381 = vmatpush.msra.mxu0 0.0
      %382 = vmatpush.msra.mxu0 0.0
      %383 = vmatpush.msra.mxu0 0.0
      %384 = vmatpush.msra.mxu0 0.0
      %385 = vmatpush.msra.mxu0 0.0
      %386 = vmatpush.msra.mxu0 0.0
      %387 = vmatpush.msra.mxu0 0.0
      %388 = vmatpush.msra.mxu0 0.0
      %389 = vmatpush.msra.mxu0 0.0
      %390 = vmatpush.msra.mxu0 0.0
      %391 = vmatpush.msra.mxu0 0.0
      %392 = vmatpush.msra.mxu0 0.0
      %393 = vmatpush.msra.mxu0 %v327
      %394 = vmatpush.msra.mxu0 %v326
      %395 = vmatmul.f32.gmra.mxu0 %v332
      %v396 = vpop.f32.mrf.mxu0
      %v397 = vadd.f32 %v329, %v396
      %398 = vmatmul.f32.gmra.mxu0 %v335
      %v399 = vpop.f32.mrf.mxu0
      %v400 = vadd.f32 %v329, %v399
      %401 = vmatmul.f32.gmra.mxu0 %v338
      %v402 = vpop.f32.mrf.mxu0
      %v403 = vadd.f32 %v329, %v402
      %404 = vmatmul.f32.gmra.mxu0 %v341
      %v405 = vpop.f32.mrf.mxu0
      %v406 = vadd.f32 %v329, %v405
      %407 = vmatmul.f32.gmra.mxu0 %v344
      %v408 = vpop.f32.mrf.mxu0
      %v409 = vadd.f32 %v329, %v408
      %410 = vmatmul.f32.gmra.mxu0 %v347
      %v411 = vpop.f32.mrf.mxu0
      %v412 = vadd.f32 %v329, %v411
      %413 = vmatmul.f32.gmra.mxu0 %v350
      %v414 = vpop.f32.mrf.mxu0
      %v415 = vadd.f32 %v329, %v414
      %416 = vmatmul.f32.gmra.mxu0 %v353
      %v417 = vpop.f32.mrf.mxu0
      %v418 = vadd.f32 %v329, %v417
      %419 = vmatmul.f32.gmra.mxu0 %v356
      %v420 = vpop.f32.mrf.mxu0
      %v421 = vadd.f32 %v329, %v420
      %422 = vmatmul.f32.gmra.mxu0 %v359
      %v423 = vpop.f32.mrf.mxu0
      %v424 = vadd.f32 %v329, %v423
      %425 = vmatmul.f32.gmra.mxu0 %v362
      %v426 = vpop.f32.mrf.mxu0
      %v427 = vadd.f32 %v329, %v426
      %428 = vmatmul.f32.gmra.mxu0 %v365
      %v429 = vpop.f32.mrf.mxu0
      %v430 = vadd.f32 %v329, %v429
      %431 = vmatmul.f32.gmra.mxu0 %v368
      %v432 = vpop.f32.mrf.mxu0
      %v433 = vadd.f32 %v329, %v432
      %434 = vmatmul.f32.gmra.mxu0 %v371
      %v435 = vpop.f32.mrf.mxu0
      %v436 = vadd.f32 %v329, %v435
      %437 = vmatmul.f32.gmra.mxu0 %v374
      %v438 = vpop.f32.mrf.mxu0
      %v439 = vadd.f32 %v329, %v438
      %440 = vmatmul.f32.gmra.mxu0 %v377
      %v441 = vpop.f32.mrf.mxu0
      %v442 = vadd.f32 %v329, %v441
      %443 = vdwg.mxu0
      %444 = vmax.xlane.f32.xlu0 %v397
      %v445 = vpop.xlane.xlu0 %444
      %446 = vmax.xlane.f32.xlu0 %v400
      %v447 = vpop.xlane.xlu0 %446
      %448 = vmax.xlane.f32.xlu0 %v403
      %v449 = vpop.xlane.xlu0 %448
      %450 = vmax.xlane.f32.xlu0 %v406
      %v451 = vpop.xlane.xlu0 %450
      %452 = vmax.xlane.f32.xlu0 %v409
      %v453 = vpop.xlane.xlu0 %452
      %454 = vmax.xlane.f32.xlu0 %v412
      %v455 = vpop.xlane.xlu0 %454
      %456 = vmax.xlane.f32.xlu0 %v415
      %v457 = vpop.xlane.xlu0 %456
      %458 = vmax.xlane.f32.xlu0 %v418
      %v459 = vpop.xlane.xlu0 %458
      %460 = vmax.xlane.f32.xlu0 %v421
      %v461 = vpop.xlane.xlu0 %460
      %462 = vmax.xlane.f32.xlu0 %v424
      %v463 = vpop.xlane.xlu0 %462
      %464 = vmax.xlane.f32.xlu0 %v427
      %v465 = vpop.xlane.xlu0 %464
      %466 = vmax.xlane.f32.xlu0 %v430
      %v467 = vpop.xlane.xlu0 %466
      %468 = vmax.xlane.f32.xlu0 %v433
      %v469 = vpop.xlane.xlu0 %468
      %470 = vmax.xlane.f32.xlu0 %v436
      %v471 = vpop.xlane.xlu0 %470
      %472 = vmax.xlane.f32.xlu0 %v439
      %v473 = vpop.xlane.xlu0 %472
      %474 = vmax.xlane.f32.xlu0 %v442
      %v475 = vpop.xlane.xlu0 %474
      %v476 = vsub.f32 %v397, %v445
      %v477 = vsub.f32 %v400, %v447
      %v478 = vsub.f32 %v403, %v449
      %v479 = vsub.f32 %v406, %v451
      %v480 = vsub.f32 %v409, %v453
      %v481 = vsub.f32 %v412, %v455
      %v482 = vsub.f32 %v415, %v457
      %v483 = vsub.f32 %v418, %v459
      %v484 = vsub.f32 %v421, %v461
      %v485 = vsub.f32 %v424, %v463
      %v486 = vsub.f32 %v427, %v465
      %v487 = vsub.f32 %v430, %v467
      %v488 = vsub.f32 %v433, %v469
      %v489 = vsub.f32 %v436, %v471
      %v490 = vsub.f32 %v439, %v473
      %v491 = vsub.f32 %v442, %v475
      %v492 = vmul.f32 %v476, 1.442695
      %v493 = vpow.pop %v492
      %v494 = vmul.f32 %v477, 1.442695
      %v495 = vpow.pop %v494
      %v496 = vmul.f32 %v478, 1.442695
      %v497 = vpow.pop %v496
      %v498 = vmul.f32 %v479, 1.442695
      %v499 = vpow.pop %v498
      %v500 = vmul.f32 %v480, 1.442695
      %v501 = vpow.pop %v500
      %v502 = vmul.f32 %v481, 1.442695
      %v503 = vpow.pop %v502
      %v504 = vmul.f32 %v482, 1.442695
      %v505 = vpow.pop %v504
      %v506 = vmul.f32 %v483, 1.442695
      %v507 = vpow.pop %v506
      %v508 = vmul.f32 %v484, 1.442695
      %v509 = vpow.pop %v508
      %v510 = vmul.f32 %v485, 1.442695
      %v511 = vpow.pop %v510
      %v512 = vmul.f32 %v486, 1.442695
      %v513 = vpow.pop %v512
      %v514 = vmul.f32 %v487, 1.442695
      %v515 = vpow.pop %v514
      %v516 = vmul.f32 %v488, 1.442695
      %v517 = vpow.pop %v516
      %v518 = vmul.f32 %v489, 1.442695
      %v519 = vpow.pop %v518
      %v520 = vmul.f32 %v490, 1.442695
      %v521 = vpow.pop %v520
      %v522 = vmul.f32 %v491, 1.442695
      %v523 = vpow.pop %v522
      %524 = vadd.xlane.f32.xlu0 %v493
      %v525 = vpop.xlane.xlu0 %524
      %526 = vadd.xlane.f32.xlu0 %v495
      %v527 = vpop.xlane.xlu0 %526
      %528 = vadd.xlane.f32.xlu0 %v497
      %v529 = vpop.xlane.xlu0 %528
      %530 = vadd.xlane.f32.xlu0 %v499
      %v531 = vpop.xlane.xlu0 %530
      %532 = vadd.xlane.f32.xlu0 %v501
      %v533 = vpop.xlane.xlu0 %532
      %534 = vadd.xlane.f32.xlu0 %v503
      %v535 = vpop.xlane.xlu0 %534
      %536 = vadd.xlane.f32.xlu0 %v505
      %v537 = vpop.xlane.xlu0 %536
      %538 = vadd.xlane.f32.xlu0 %v507
      %v539 = vpop.xlane.xlu0 %538
      %540 = vadd.xlane.f32.xlu0 %v509
      %v541 = vpop.xlane.xlu0 %540
      %542 = vadd.xlane.f32.xlu0 %v511
      %v543 = vpop.xlane.xlu0 %542
      %544 = vadd.xlane.f32.xlu0 %v513
      %v545 = vpop.xlane.xlu0 %544
      %546 = vadd.xlane.f32.xlu0 %v515
      %v547 = vpop.xlane.xlu0 %546
      %548 = vadd.xlane.f32.xlu0 %v517
      %v549 = vpop.xlane.xlu0 %548
      %550 = vadd.xlane.f32.xlu0 %v519
      %v551 = vpop.xlane.xlu0 %550
      %552 = vadd.xlane.f32.xlu0 %v521
      %v553 = vpop.xlane.xlu0 %552
      %554 = vadd.xlane.f32.xlu0 %v523
      %v555 = vpop.xlane.xlu0 %554
      %v556 = vrcp.pop %v525
      %v557 = vmul.f32 %v525, %v556
      %v558 = vsub.f32 1.0, %v557
      %v559 = vmul.f32 %v556, %v558
      %v560 = vadd.f32 %v556, %v559
      %vm561 = vweird.f32 %v525
      %vm562 = vweird.f32 %v556
      %vm563 = vmor %vm561, %vm562
      %v564 = vsel %vm563, %v556, %v560
      %v565 = vand.u32 2147483647, %v525
      %vm566 = vcmp.eq.f32.partialorder %v565, 8.507059e+37
      %v567 = vand.u32 %v525, 2147483648
      %v568 = vor.u32 1.1754944e-38, %v567
      %v569 = vsel %vm566, %v568, %v564
      %v570 = vmul.f32 %v493, %v569
      %v571 = vrcp.pop %v527
      %v572 = vmul.f32 %v527, %v571
      %v573 = vsub.f32 1.0, %v572
      %v574 = vmul.f32 %v571, %v573
      %v575 = vadd.f32 %v571, %v574
      %vm576 = vweird.f32 %v527
      %vm577 = vweird.f32 %v571
      %vm578 = vmor %vm576, %vm577
      %v579 = vsel %vm578, %v571, %v575
      %v580 = vand.u32 2147483647, %v527
      %vm581 = vcmp.eq.f32.partialorder %v580, 8.507059e+37
      %v582 = vand.u32 %v527, 2147483648
      %v583 = vor.u32 1.1754944e-38, %v582
      %v584 = vsel %vm581, %v583, %v579
      %v585 = vmul.f32 %v495, %v584
      %v586 = vrcp.pop %v529
      %v587 = vmul.f32 %v529, %v586
      %v588 = vsub.f32 1.0, %v587
      %v589 = vmul.f32 %v586, %v588
      %v590 = vadd.f32 %v586, %v589
      %vm591 = vweird.f32 %v529
      %vm592 = vweird.f32 %v586
      %vm593 = vmor %vm591, %vm592
      %v594 = vsel %vm593, %v586, %v590
      %v595 = vand.u32 2147483647, %v529
      %vm596 = vcmp.eq.f32.partialorder %v595, 8.507059e+37
      %v597 = vand.u32 %v529, 2147483648
      %v598 = vor.u32 1.1754944e-38, %v597
      %v599 = vsel %vm596, %v598, %v594
      %v600 = vmul.f32 %v497, %v599
      %v601 = vrcp.pop %v531
      %v602 = vmul.f32 %v531, %v601
      %v603 = vsub.f32 1.0, %v602
      %v604 = vmul.f32 %v601, %v603
      %v605 = vadd.f32 %v601, %v604
      %vm606 = vweird.f32 %v531
      %vm607 = vweird.f32 %v601
      %vm608 = vmor %vm606, %vm607
      %v609 = vsel %vm608, %v601, %v605
      %v610 = vand.u32 2147483647, %v531
      %vm611 = vcmp.eq.f32.partialorder %v610, 8.507059e+37
      %v612 = vand.u32 %v531, 2147483648
      %v613 = vor.u32 1.1754944e-38, %v612
      %v614 = vsel %vm611, %v613, %v609
      %v615 = vmul.f32 %v499, %v614
      %v616 = vrcp.pop %v533
      %v617 = vmul.f32 %v533, %v616
      %v618 = vsub.f32 1.0, %v617
      %v619 = vmul.f32 %v616, %v618
      %v620 = vadd.f32 %v616, %v619
      %vm621 = vweird.f32 %v533
      %vm622 = vweird.f32 %v616
      %vm623 = vmor %vm621, %vm622
      %v624 = vsel %vm623, %v616, %v620
      %v625 = vand.u32 2147483647, %v533
      %vm626 = vcmp.eq.f32.partialorder %v625, 8.507059e+37
      %v627 = vand.u32 %v533, 2147483648
      %v628 = vor.u32 1.1754944e-38, %v627
      %v629 = vsel %vm626, %v628, %v624
      %v630 = vmul.f32 %v501, %v629
      %v631 = vrcp.pop %v535
      %v632 = vmul.f32 %v535, %v631
      %v633 = vsub.f32 1.0, %v632
      %v634 = vmul.f32 %v631, %v633
      %v635 = vadd.f32 %v631, %v634
      %vm636 = vweird.f32 %v535
      %vm637 = vweird.f32 %v631
      %vm638 = vmor %vm636, %vm637
      %v639 = vsel %vm638, %v631, %v635
      %v640 = vand.u32 2147483647, %v535
      %vm641 = vcmp.eq.f32.partialorder %v640, 8.507059e+37
      %v642 = vand.u32 %v535, 2147483648
      %v643 = vor.u32 1.1754944e-38, %v642
      %v644 = vsel %vm641, %v643, %v639
      %v645 = vmul.f32 %v503, %v644
      %v646 = vrcp.pop %v537
      %v647 = vmul.f32 %v537, %v646
      %v648 = vsub.f32 1.0, %v647
      %v649 = vmul.f32 %v646, %v648
      %v650 = vadd.f32 %v646, %v649
      %vm651 = vweird.f32 %v537
      %vm652 = vweird.f32 %v646
      %vm653 = vmor %vm651, %vm652
      %v654 = vsel %vm653, %v646, %v650
      %v655 = vand.u32 2147483647, %v537
      %vm656 = vcmp.eq.f32.partialorder %v655, 8.507059e+37
      %v657 = vand.u32 %v537, 2147483648
      %v658 = vor.u32 1.1754944e-38, %v657
      %v659 = vsel %vm656, %v658, %v654
      %v660 = vmul.f32 %v505, %v659
      %v661 = vrcp.pop %v539
      %v662 = vmul.f32 %v539, %v661
      %v663 = vsub.f32 1.0, %v662
      %v664 = vmul.f32 %v661, %v663
      %v665 = vadd.f32 %v661, %v664
      %vm666 = vweird.f32 %v539
      %vm667 = vweird.f32 %v661
      %vm668 = vmor %vm666, %vm667
      %v669 = vsel %vm668, %v661, %v665
      %v670 = vand.u32 2147483647, %v539
      %vm671 = vcmp.eq.f32.partialorder %v670, 8.507059e+37
      %v672 = vand.u32 %v539, 2147483648
      %v673 = vor.u32 1.1754944e-38, %v672
      %v674 = vsel %vm671, %v673, %v669
      %v675 = vmul.f32 %v507, %v674
      %v676 = vrcp.pop %v541
      %v677 = vmul.f32 %v541, %v676
      %v678 = vsub.f32 1.0, %v677
      %v679 = vmul.f32 %v676, %v678
      %v680 = vadd.f32 %v676, %v679
      %vm681 = vweird.f32 %v541
      %vm682 = vweird.f32 %v676
      %vm683 = vmor %vm681, %vm682
      %v684 = vsel %vm683, %v676, %v680
      %v685 = vand.u32 2147483647, %v541
      %vm686 = vcmp.eq.f32.partialorder %v685, 8.507059e+37
      %v687 = vand.u32 %v541, 2147483648
      %v688 = vor.u32 1.1754944e-38, %v687
      %v689 = vsel %vm686, %v688, %v684
      %v690 = vmul.f32 %v509, %v689
      %v691 = vrcp.pop %v543
      %v692 = vmul.f32 %v543, %v691
      %v693 = vsub.f32 1.0, %v692
      %v694 = vmul.f32 %v691, %v693
      %v695 = vadd.f32 %v691, %v694
      %vm696 = vweird.f32 %v543
      %vm697 = vweird.f32 %v691
      %vm698 = vmor %vm696, %vm697
      %v699 = vsel %vm698, %v691, %v695
      %v700 = vand.u32 2147483647, %v543
      %vm701 = vcmp.eq.f32.partialorder %v700, 8.507059e+37
      %v702 = vand.u32 %v543, 2147483648
      %v703 = vor.u32 1.1754944e-38, %v702
      %v704 = vsel %vm701, %v703, %v699
      %v705 = vmul.f32 %v511, %v704
      %v706 = vrcp.pop %v545
      %v707 = vmul.f32 %v545, %v706
      %v708 = vsub.f32 1.0, %v707
      %v709 = vmul.f32 %v706, %v708
      %v710 = vadd.f32 %v706, %v709
      %vm711 = vweird.f32 %v545
      %vm712 = vweird.f32 %v706
      %vm713 = vmor %vm711, %vm712
      %v714 = vsel %vm713, %v706, %v710
      %v715 = vand.u32 2147483647, %v545
      %vm716 = vcmp.eq.f32.partialorder %v715, 8.507059e+37
      %v717 = vand.u32 %v545, 2147483648
      %v718 = vor.u32 1.1754944e-38, %v717
      %v719 = vsel %vm716, %v718, %v714
      %v720 = vmul.f32 %v513, %v719
      %v721 = vrcp.pop %v547
      %v722 = vmul.f32 %v547, %v721
      %v723 = vsub.f32 1.0, %v722
      %v724 = vmul.f32 %v721, %v723
      %v725 = vadd.f32 %v721, %v724
      %vm726 = vweird.f32 %v547
      %vm727 = vweird.f32 %v721
      %vm728 = vmor %vm726, %vm727
      %v729 = vsel %vm728, %v721, %v725
      %v730 = vand.u32 2147483647, %v547
      %vm731 = vcmp.eq.f32.partialorder %v730, 8.507059e+37
      %v732 = vand.u32 %v547, 2147483648
      %v733 = vor.u32 1.1754944e-38, %v732
      %v734 = vsel %vm731, %v733, %v729
      %v735 = vmul.f32 %v515, %v734
      %v736 = vrcp.pop %v549
      %v737 = vmul.f32 %v549, %v736
      %v738 = vsub.f32 1.0, %v737
      %v739 = vmul.f32 %v736, %v738
      %v740 = vadd.f32 %v736, %v739
      %vm741 = vweird.f32 %v549
      %vm742 = vweird.f32 %v736
      %vm743 = vmor %vm741, %vm742
      %v744 = vsel %vm743, %v736, %v740
      %v745 = vand.u32 2147483647, %v549
      %vm746 = vcmp.eq.f32.partialorder %v745, 8.507059e+37
      %v747 = vand.u32 %v549, 2147483648
      %v748 = vor.u32 1.1754944e-38, %v747
      %v749 = vsel %vm746, %v748, %v744
      %v750 = vmul.f32 %v517, %v749
      %v751 = vrcp.pop %v551
      %v752 = vmul.f32 %v551, %v751
      %v753 = vsub.f32 1.0, %v752
      %v754 = vmul.f32 %v751, %v753
      %v755 = vadd.f32 %v751, %v754
      %vm756 = vweird.f32 %v551
      %vm757 = vweird.f32 %v751
      %vm758 = vmor %vm756, %vm757
      %v759 = vsel %vm758, %v751, %v755
      %v760 = vand.u32 2147483647, %v551
      %vm761 = vcmp.eq.f32.partialorder %v760, 8.507059e+37
      %v762 = vand.u32 %v551, 2147483648
      %v763 = vor.u32 1.1754944e-38, %v762
      %v764 = vsel %vm761, %v763, %v759
      %v765 = vmul.f32 %v519, %v764
      %v766 = vrcp.pop %v553
      %v767 = vmul.f32 %v553, %v766
      %v768 = vsub.f32 1.0, %v767
      %v769 = vmul.f32 %v766, %v768
      %v770 = vadd.f32 %v766, %v769
      %vm771 = vweird.f32 %v553
      %vm772 = vweird.f32 %v766
      %vm773 = vmor %vm771, %vm772
      %v774 = vsel %vm773, %v766, %v770
      %v775 = vand.u32 2147483647, %v553
      %vm776 = vcmp.eq.f32.partialorder %v775, 8.507059e+37
      %v777 = vand.u32 %v553, 2147483648
      %v778 = vor.u32 1.1754944e-38, %v777
      %v779 = vsel %vm776, %v778, %v774
      %v780 = vmul.f32 %v521, %v779
      %v781 = vrcp.pop %v555
      %v782 = vmul.f32 %v555, %v781
      %v783 = vsub.f32 1.0, %v782
      %v784 = vmul.f32 %v781, %v783
      %v785 = vadd.f32 %v781, %v784
      %vm786 = vweird.f32 %v555
      %vm787 = vweird.f32 %v781
      %vm788 = vmor %vm786, %vm787
      %v789 = vsel %vm788, %v781, %v785
      %v790 = vand.u32 2147483647, %v555
      %vm791 = vcmp.eq.f32.partialorder %v790, 8.507059e+37
      %v792 = vand.u32 %v555, 2147483648
      %v793 = vor.u32 1.1754944e-38, %v792
      %v794 = vsel %vm791, %v793, %v789
      %v795 = vmul.f32 %v523, %v794
      %796 = vst [vmem:[%s172] sm:$0xff] %v570
      %797 = vst [vmem:[%s172 + $0x8] sm:$0xff] %v585
      %798 = vst [vmem:[%s172 + $0x10] sm:$0xff] %v600
      %799 = vst [vmem:[%s172 + $0x18] sm:$0xff] %v615
      %800 = vst [vmem:[%s172 + $0x20] sm:$0xff] %v630
      %801 = vst [vmem:[%s172 + $0x28] sm:$0xff] %v645
      %802 = vst [vmem:[%s172 + $0x30] sm:$0xff] %v660
      %803 = vst [vmem:[%s172 + $0x38] sm:$0xff] %v675
      %804 = vst [vmem:[%s172 + $0x40] sm:$0xff] %v690
      %805 = vst [vmem:[%s172 + $0x48] sm:$0xff] %v705
      %806 = vst [vmem:[%s172 + $0x50] sm:$0xff] %v720
      %807 = vst [vmem:[%s172 + $0x58] sm:$0xff] %v735
      %808 = vst [vmem:[%s172 + $0x60] sm:$0xff] %v750
      %809 = vst [vmem:[%s172 + $0x68] sm:$0xff] %v765
      %810 = vst [vmem:[%s172 + $0x70] sm:$0xff] %v780
      %811 = vst [vmem:[%s172 + $0x78] sm:$0xff] %v795
      %s812 = smul.u32 16, %s14
      %p813 = scmp.lt.s32.totalorder %s812, 31
      %s814 = scalar_select %p813, %s812, 31
      %s815 = smul.addr %s814, 8
      %s816 = scalar_lea.vmem %s3, %s815
      // Predicated region
      $region33: #{policy_forward_packed.1} parent=31 // pred_check
        %p817 = pneg %p100
      $region34: #{policy_forward_packed.1} parent=31 // pred_check_branch
        %819 = sbr.rel (%p817) target = $region36
      $region35: #{policy_forward_packed.1} parent=31 // pred_region
        %s820 = smul.u32 16, %s14
      $region36: #{policy_forward_packed.1} parent=31 // pred_fallthru
        _
    $region32: #{policy_forward_packed.1} parent=5 // pred_fallthru
      _
    %p821 = scmp.le.s32.totalorder 2, %s9
    // Predicated region
    $region37: #{policy_forward_packed.1} parent=5 // pred_check
      %p822 = pneg %p821
    $region38: #{policy_forward_packed.1} parent=5 // pred_check_branch
      %824 = sbr.rel (%p822) target = $region40
    $region39: #{policy_forward_packed.1} parent=5 // pred_region
      %s825 = ssub.s32 %s9, 2
      // Predicated region
      $region41: #{policy_forward_packed.1} parent=39 // pred_check
        %p826 = pneg %p106
      $region42: #{policy_forward_packed.1} parent=39 // pred_check_branch
        %828 = sbr.rel (%p826) target = $region44
      $region43: #{policy_forward_packed.1} parent=39 // pred_region
        %s829 = smul.u32 16, %s15
        %p830 = scmp.lt.s32.totalorder %s829, 31
        %s831 = scalar_select %p830, %s829, 31
        %s832 = smul.addr %s831, 8
        %s833 = scalar_lea.vmem %s3, %s832
      $region44: #{policy_forward_packed.1} parent=39 // pred_fallthru
        _
    $region40: #{policy_forward_packed.1} parent=5 // pred_fallthru
      _
  $region6: #{policy_forward_packed.1} parent=0 // loop_footer
    %s13 = sadd.s32 1, %s9
  $region7: #{policy_forward_packed.1} parent=0 // loop_footer_branch
    %8 = sbr.rel target = $region3
  $region8: #{policy_forward_packed.1} parent=0 // loop_exit
    _

</llo_original>
